<compile_context>
chip_gen: v7x
topology: tpu7x:2x2x1
jax: 0.10.0
libtpu: 0.0.40
codegen_flags: <defaults>
</compile_context>

<pallas_src>
import numpy as np
import jax
import jax.numpy as jnp
from jax.experimental import pallas as pl
from jax.experimental.pallas import tpu as pltpu


def _gaussian_window1d(window_size: int, sigma: float) -> np.ndarray:
    """Deterministic 1D Gaussian window, matching the module's buffer init."""
    assert window_size % 2 == 1, "Window size must be odd."
    x = np.arange(-(window_size // 2), window_size // 2 + 1, dtype=np.float64)
    w = np.exp(-0.5 * x * x / (sigma * sigma))
    return w / w.sum()


def _band_matrix(n: int, g: np.ndarray) -> np.ndarray:
    """M[i, j] = g[j - i + pad] inside the band |j - i| <= pad, else 0.

    Entries clipped at the matrix edge are simply absent, which is exactly the
    zero-padding ("same") behaviour of F.conv2d(padding=K//2).
    """
    pad = g.shape[0] // 2
    m = np.zeros((n, n), dtype=np.float64)
    for d in range(-pad, pad + 1):
        i = np.arange(max(0, -d), min(n, n - d))
        m[i, i + d] = g[d + pad]
    return m


def _pick_vmem_limit_bytes(per_step_block_bytes: int) -> int:
    """Scoped-VMEM request from actual buffer sizes, capped per generation."""
    # double-buffered in/out blocks + resident band matrices + matmul headroom
    need = 2 * per_step_block_bytes + (8 << 20)
    try:
        physical = int(pltpu.get_tpu_info().vmem_capacity_bytes)
    except Exception:
        physical = 64 << 20  # conservative: v7x per-TensorCore VMEM
    cap = (physical * 3) // 4  # leave headroom for compiler-internal scratch
    return int(min(max(need, 32 << 20), cap))


def make_gaussian_filter2d(window_size: int = 11, in_channels: int = 1,
                           sigma: float = 1.5):
    if window_size % 2 != 1:
        raise ValueError("Window size must be odd.")
    g1d = _gaussian_window1d(window_size, sigma)

    def kernel(a_ref, b_ref, x_ref, o_ref):
        # a_ref : (H, H)   row band matrix  (H-direction taps + zero padding)
        # b_ref : (W, W)   col band matrix  (W-direction taps + zero padding)
        # x_ref : (C, H, W) input block (one batch element, all channels)
        # o_ref : (C, H, W) output block
        a = a_ref[...]
        b = b_ref[...]
        num_c = x_ref.shape[0]
        # SSIM channel counts are tiny (1..4): static unroll keeps every step
        # a clean pair of 2D MXU matmuls with f32 accumulation.
        for ch in range(num_c):
            xc = x_ref[ch].astype(a.dtype)
            t = jnp.dot(a, xc, preferred_element_type=jnp.float32)       # H pass
            yc = jnp.dot(t.astype(b.dtype), b,
                         preferred_element_type=jnp.float32)             # W pass
            o_ref[ch] = yc.astype(o_ref.dtype)

    def forward(x):
        n, c, h, w = x.shape
        if c != in_channels:
            raise ValueError("channel count must match in_channels")

        # bf16 inputs -> bf16 MXU operands (f32 accumulation); else pure f32.
        band_dtype = jnp.bfloat16 if x.dtype == jnp.bfloat16 else jnp.float32
        band_itemsize = 2 if band_dtype == jnp.bfloat16 else 4
        a_band = jnp.asarray(_band_matrix(h, g1d), dtype=band_dtype)     # (H, H)
        b_band = jnp.asarray(_band_matrix(w, g1d).T, dtype=band_dtype)   # (W, W)

        block = (pl.Squeezed(), c, h, w)
        x_itemsize = np.dtype(x.dtype).itemsize
        per_step_block_bytes = (2 * c * h * w * x_itemsize            # x + out
                                + (h * h + w * w) * band_itemsize)    # A + B

        return pl.pallas_call(
            kernel,
            out_shape=jax.ShapeDtypeStruct((n, c, h, w), x.dtype),
            grid_spec=pltpu.PrefetchScalarGridSpec(
                num_scalar_prefetch=0,
                grid=(n,),
                in_specs=[
                    pl.BlockSpec((h, h), lambda i: (0, 0)),  # A: resident
                    pl.BlockSpec((w, w), lambda i: (0, 0)),  # B: resident
                    pl.BlockSpec(block, lambda i: (i, 0, 0, 0)),
                ],
                out_specs=pl.BlockSpec(block, lambda i: (i, 0, 0, 0)),
            ),
            compiler_params=pltpu.CompilerParams(
                dimension_semantics=("parallel",),
                vmem_limit_bytes=_pick_vmem_limit_bytes(per_step_block_bytes),
            ),
        )(a_band, b_band, x)

    return forward


def _reference_f64(x: np.ndarray, window_size: int, sigma: float) -> np.ndarray:
    """Exact float64 reference for F.conv2d(x, outer(g,g), padding=K//2, groups=C)."""
    x = np.asarray(x, dtype=np.float64)
    g = _gaussian_window1d(window_size, sigma)
    pad = window_size // 2
    n, c, h, w = x.shape
    xp = np.zeros((n, c, h + 2 * pad, w + 2 * pad), dtype=np.float64)
    xp[:, :, pad:pad + h, pad:pad + w] = x
    out = np.zeros((n, c, h, w), dtype=np.float64)
    for di in range(window_size):
        for dj in range(window_size):
            out += g[di] * g[dj] * xp[:, :, di:di + h, dj:dj + w]
    return out


if __name__ == "__main__":
    window_size, sigma = 11, 1.5
    N, C, H, W = 2, 4, 16, 16

    key = jax.random.PRNGKey(0)
    x = jax.random.normal(key, (N, C, H, W), dtype=jnp.float32)

    gaussian_filter = make_gaussian_filter2d(window_size=window_size,
                                             in_channels=C, sigma=sigma)
    y = jax.block_until_ready(gaussian_filter(x))

    # Exact float64 host reference; allow headroom for the MXU's internal
    # multi-pass f32 matmul rounding (vs. the old VPU-exact path).
    y_ref = _reference_f64(np.asarray(x), window_size, sigma)
    np.testing.assert_allclose(np.asarray(y, dtype=np.float64), y_ref,
                               rtol=2e-4, atol=2e-4)

    print("KERNEL_OK")
</pallas_src>

<mosaic_0001>
module attributes {stable_mosaic.version = 11 : i64} {
  func.func @kernel(%arg0: i32, %arg1: memref<16x16xf32, #tpu.memory_space<vmem>>, %arg2: memref<16x16xf32, #tpu.memory_space<vmem>>, %arg3: memref<1x4x16x16xf32, #tpu.memory_space<vmem>>, %arg4: memref<1x4x16x16xf32, #tpu.memory_space<vmem>>) attributes {dimension_semantics = [#tpu.dimension_semantics<parallel>], iteration_bounds = array<i64: 2>, scalar_prefetch = 0 : i64, scratch_operands = 0 : i64, tpu.core_type = #tpu.core_type<tc>, window_params = [{pipeline_mode = #tpu.pipeline_mode<synchronous>, transform_indices = @transform_0, window_bounds = array<i64: 16, 16>}, {pipeline_mode = #tpu.pipeline_mode<synchronous>, transform_indices = @transform_1, window_bounds = array<i64: 16, 16>}, {transform_indices = @transform_2, window_bounds = array<i64: 1, 4, 16, 16>}, {transform_indices = @transform_3, window_bounds = array<i64: 1, 4, 16, 16>}]} {
    %c0 = arith.constant 0 : index
    %c0_0 = arith.constant 0 : index
    %0 = vector.load %arg1[%c0, %c0_0] : memref<16x16xf32, #tpu.memory_space<vmem>>, vector<16x16xf32>
    %c0_1 = arith.constant 0 : index
    %c0_2 = arith.constant 0 : index
    %1 = vector.load %arg2[%c0_1, %c0_2] : memref<16x16xf32, #tpu.memory_space<vmem>>, vector<16x16xf32>
    %c0_3 = arith.constant 0 : index
    %c0_4 = arith.constant 0 : index
    %c0_5 = arith.constant 0 : index
    %c0_6 = arith.constant 0 : index
    %2 = vector.load %arg3[%c0_3, %c0_4, %c0_5, %c0_6] : memref<1x4x16x16xf32, #tpu.memory_space<vmem>>, vector<1x1x16x16xf32>
    %3 = vector.shape_cast %2 : vector<1x1x16x16xf32> to vector<16x16xf32>
    %cst = arith.constant dense<0.000000e+00> : vector<16x16xf32>
    %4 = tpu.matmul %0, %3, %cst {dimension_numbers = #tpu.dot_dimension_numbers<[1], [0], [0], [1], [0, 0, 1, 1], [], []>} : vector<16x16xf32>, vector<16x16xf32>, vector<16x16xf32> -> vector<16x16xf32>
    %cst_7 = arith.constant dense<0.000000e+00> : vector<16x16xf32>
    %5 = tpu.matmul %4, %1, %cst_7 {dimension_numbers = #tpu.dot_dimension_numbers<[1], [0], [0], [1], [0, 0, 1, 1], [], []>} : vector<16x16xf32>, vector<16x16xf32>, vector<16x16xf32> -> vector<16x16xf32>
    %c0_8 = arith.constant 0 : index
    %c0_9 = arith.constant 0 : index
    %c0_10 = arith.constant 0 : index
    %c0_11 = arith.constant 0 : index
    %6 = vector.load %arg4[%c0_8, %c0_9, %c0_10, %c0_11] : memref<1x4x16x16xf32, #tpu.memory_space<vmem>>, vector<1x1x16x16xf32>
    %7 = vector.shape_cast %6 : vector<1x1x16x16xf32> to vector<16x16xf32>
    %8 = vector.shape_cast %5 : vector<16x16xf32> to vector<1x1x16x16xf32>
    tpu.vector_store %arg4[%c0_8, %c0_9, %c0_10, %c0_11], %8 {strides = array<i32>} : memref<1x4x16x16xf32, #tpu.memory_space<vmem>>, vector<1x1x16x16xf32>,
    %c0_12 = arith.constant 0 : index
    %c1 = arith.constant 1 : index
    %c0_13 = arith.constant 0 : index
    %c0_14 = arith.constant 0 : index
    %9 = vector.load %arg3[%c0_12, %c1, %c0_13, %c0_14] : memref<1x4x16x16xf32, #tpu.memory_space<vmem>>, vector<1x1x16x16xf32>
    %10 = vector.shape_cast %9 : vector<1x1x16x16xf32> to vector<16x16xf32>
    %cst_15 = arith.constant dense<0.000000e+00> : vector<16x16xf32>
    %11 = tpu.matmul %0, %10, %cst_15 {dimension_numbers = #tpu.dot_dimension_numbers<[1], [0], [0], [1], [0, 0, 1, 1], [], []>} : vector<16x16xf32>, vector<16x16xf32>, vector<16x16xf32> -> vector<16x16xf32>
    %cst_16 = arith.constant dense<0.000000e+00> : vector<16x16xf32>
    %12 = tpu.matmul %11, %1, %cst_16 {dimension_numbers = #tpu.dot_dimension_numbers<[1], [0], [0], [1], [0, 0, 1, 1], [], []>} : vector<16x16xf32>, vector<16x16xf32>, vector<16x16xf32> -> vector<16x16xf32>
    %c0_17 = arith.constant 0 : index
    %c1_18 = arith.constant 1 : index
    %c0_19 = arith.constant 0 : index
    %c0_20 = arith.constant 0 : index
    %13 = vector.load %arg4[%c0_17, %c1_18, %c0_19, %c0_20] : memref<1x4x16x16xf32, #tpu.memory_space<vmem>>, vector<1x1x16x16xf32>
    %14 = vector.shape_cast %13 : vector<1x1x16x16xf32> to vector<16x16xf32>
    %15 = vector.shape_cast %12 : vector<16x16xf32> to vector<1x1x16x16xf32>
    tpu.vector_store %arg4[%c0_17, %c1_18, %c0_19, %c0_20], %15 {strides = array<i32>} : memref<1x4x16x16xf32, #tpu.memory_space<vmem>>, vector<1x1x16x16xf32>,
    %c0_21 = arith.constant 0 : index
    %c2 = arith.constant 2 : index
    %c0_22 = arith.constant 0 : index
    %c0_23 = arith.constant 0 : index
    %16 = vector.load %arg3[%c0_21, %c2, %c0_22, %c0_23] : memref<1x4x16x16xf32, #tpu.memory_space<vmem>>, vector<1x1x16x16xf32>
    %17 = vector.shape_cast %16 : vector<1x1x16x16xf32> to vector<16x16xf32>
    %cst_24 = arith.constant dense<0.000000e+00> : vector<16x16xf32>
    %18 = tpu.matmul %0, %17, %cst_24 {dimension_numbers = #tpu.dot_dimension_numbers<[1], [0], [0], [1], [0, 0, 1, 1], [], []>} : vector<16x16xf32>, vector<16x16xf32>, vector<16x16xf32> -> vector<16x16xf32>
    %cst_25 = arith.constant dense<0.000000e+00> : vector<16x16xf32>
    %19 = tpu.matmul %18, %1, %cst_25 {dimension_numbers = #tpu.dot_dimension_numbers<[1], [0], [0], [1], [0, 0, 1, 1], [], []>} : vector<16x16xf32>, vector<16x16xf32>, vector<16x16xf32> -> vector<16x16xf32>
    %c0_26 = arith.constant 0 : index
    %c2_27 = arith.constant 2 : index
    %c0_28 = arith.constant 0 : index
    %c0_29 = arith.constant 0 : index
    %20 = vector.load %arg4[%c0_26, %c2_27, %c0_28, %c0_29] : memref<1x4x16x16xf32, #tpu.memory_space<vmem>>, vector<1x1x16x16xf32>
    %21 = vector.shape_cast %20 : vector<1x1x16x16xf32> to vector<16x16xf32>
    %22 = vector.shape_cast %19 : vector<16x16xf32> to vector<1x1x16x16xf32>
    tpu.vector_store %arg4[%c0_26, %c2_27, %c0_28, %c0_29], %22 {strides = array<i32>} : memref<1x4x16x16xf32, #tpu.memory_space<vmem>>, vector<1x1x16x16xf32>,
    %c0_30 = arith.constant 0 : index
    %c3 = arith.constant 3 : index
    %c0_31 = arith.constant 0 : index
    %c0_32 = arith.constant 0 : index
    %23 = vector.load %arg3[%c0_30, %c3, %c0_31, %c0_32] : memref<1x4x16x16xf32, #tpu.memory_space<vmem>>, vector<1x1x16x16xf32>
    %24 = vector.shape_cast %23 : vector<1x1x16x16xf32> to vector<16x16xf32>
    %cst_33 = arith.constant dense<0.000000e+00> : vector<16x16xf32>
    %25 = tpu.matmul %0, %24, %cst_33 {dimension_numbers = #tpu.dot_dimension_numbers<[1], [0], [0], [1], [0, 0, 1, 1], [], []>} : vector<16x16xf32>, vector<16x16xf32>, vector<16x16xf32> -> vector<16x16xf32>
    %cst_34 = arith.constant dense<0.000000e+00> : vector<16x16xf32>
    %26 = tpu.matmul %25, %1, %cst_34 {dimension_numbers = #tpu.dot_dimension_numbers<[1], [0], [0], [1], [0, 0, 1, 1], [], []>} : vector<16x16xf32>, vector<16x16xf32>, vector<16x16xf32> -> vector<16x16xf32>
    %c0_35 = arith.constant 0 : index
    %c3_36 = arith.constant 3 : index
    %c0_37 = arith.constant 0 : index
    %c0_38 = arith.constant 0 : index
    %27 = vector.load %arg4[%c0_35, %c3_36, %c0_37, %c0_38] : memref<1x4x16x16xf32, #tpu.memory_space<vmem>>, vector<1x1x16x16xf32>
    %28 = vector.shape_cast %27 : vector<1x1x16x16xf32> to vector<16x16xf32>
    %29 = vector.shape_cast %26 : vector<16x16xf32> to vector<1x1x16x16xf32>
    tpu.vector_store %arg4[%c0_35, %c3_36, %c0_37, %c0_38], %29 {strides = array<i32>} : memref<1x4x16x16xf32, #tpu.memory_space<vmem>>, vector<1x1x16x16xf32>,
    return
  }
  func.func @transform_0(%arg0: i32) -> (i32, i32) {
    %c0_i32 = arith.constant 0 : i32
    %c0_i32_0 = arith.constant 0 : i32
    %c0_i32_1 = arith.constant 0 : i32
    return %c0_i32, %c0_i32_0 : i32, i32
  }
  func.func @transform_1(%arg0: i32) -> (i32, i32) {
    %c0_i32 = arith.constant 0 : i32
    %c0_i32_0 = arith.constant 0 : i32
    %c0_i32_1 = arith.constant 0 : i32
    return %c0_i32, %c0_i32_0 : i32, i32
  }
  func.func @transform_2(%arg0: i32) -> (i32, i32, i32, i32) {
    %c0_i32 = arith.constant 0 : i32
    %c0_i32_0 = arith.constant 0 : i32
    %c0_i32_1 = arith.constant 0 : i32
    %c0_i32_2 = arith.constant 0 : i32
    return %arg0, %c0_i32, %c0_i32_0, %c0_i32_1 : i32, i32, i32, i32
  }
  func.func @transform_3(%arg0: i32) -> (i32, i32, i32, i32) {
    %c0_i32 = arith.constant 0 : i32
    %c0_i32_0 = arith.constant 0 : i32
    %c0_i32_1 = arith.constant 0 : i32
    %c0_i32_2 = arith.constant 0 : i32
    return %arg0, %c0_i32, %c0_i32_0, %c0_i32_1 : i32, i32, i32, i32
  }
}

</mosaic_0001>

<llo_original>
// kernel: tpu_custom_call.1
$region0: #{tpu_custom_call.1}
  #allocation0 [shape = 'u32[]', space=smem, size = 0x4, offset = 0x4, fixed_abs, tag = 'smem constant byte address 0x4 - core index']
  #allocation1 [shape = 'u32[144,128]{1,0:T(1,128)}', space=vmem, size = 0x12000, scoped, tag = 'internal scratch']
  %s0 = inlined_call_operand.hbm [shape: f32[16,16], index: 0, kind: input, shape index: {}]
  %s1 = inlined_call_operand.hbm [shape: f32[16,16], index: 1, kind: input, shape index: {}]
  %s2 = inlined_call_operand.hbm [shape: f32[2,4,16,16], index: 2, kind: input, shape index: {}]
  %s3 = inlined_call_operand.hbm [shape: f32[2,4,16,16], index: 3, kind: output, shape index: {}]
  %s4 = sld [smem:[#allocation0]]
  $region57: #{tpu_custom_call.1} parent=0
    _
  %s6 = ssub.s32 1, %s4
  %s7 = scalar_select 0, %s6, %s4
  $region1: #{tpu_custom_call.1} parent=0
    #allocation2 [shape = 'u8[8192]{0}', space=vmem, size = 0x2000, scoped, tag = 'input window, operand 0, single buffered']
    #allocation3 [shape = 's32[2]{0}', space=sflag, size = 0x8, scoped, tag = 'scoped memory for tpu_custom_call.1']
    #allocation4 [shape = 's32[2]{0}', space=sflag, size = 0x8, scoped, tag = 'scoped memory for tpu_custom_call.1']
    #allocation5 [shape = 'u8[8192]{0}', space=vmem, size = 0x2000, scoped, tag = 'input window, operand 1, single buffered']
    #allocation6 [shape = 's32[1]{0}', space=sflag, size = 0x4, scoped, tag = 'scoped memory for tpu_custom_call.1']
    #allocation7 [shape = 'u8[65536]{0}', space=vmem, size = 0x10000, scoped, tag = 'input window, operand 2']
    #allocation8 [shape = 'u8[65536]{0}', space=vmem, size = 0x10000, scoped, tag = 'output window, operand 0']
    %8 = vsyncpa [#allocation3], 0
    %9 = vsyncpa [#allocation6], 0
    %10 = vsyncpa [#allocation4], 0
    %s11 = scalar_lea.sflag [#allocation4], 1
    %12 = vsyncpa %s11, 0
    loop: start=0, step=1, limit=4
    $region2: #{tpu_custom_call.1} parent=1 // loop_pre_header
      _
    $region3: #{tpu_custom_call.1} parent=1 // loop_header
      %s14 = sphi 0, %s18
      %p15 = scmp.ge.s32.totalorder %s14, 4
      %s22 = sphi 0, %s22
      %s24 = sphi 0, %s22
      %s25 = sphi 0, %s24
      %s39 = sphi 0, %s25
      %s43 = sphi 0, %s43
      %s45 = sphi 0, %s43
      %s46 = sphi 0, %s45
      %s60 = sphi 0, %s46
      %s66 = sphi 0, %s68
      %s69 = sphi 0, %s66
      %s70 = sphi 0, %s69
      %s86 = sphi 0, %s70
      %s92 = sphi 0, %s94
      %s95 = sphi 0, %s92
      %s96 = sphi 0, %s95
      %s112 = sphi 0, %s96
    $region4: #{tpu_custom_call.1} parent=1 // loop_header_branch
      %17 = sbr.rel (%p15) target = $region8
    $region5: #{tpu_custom_call.1} parent=1 // loop_body
      %s19 = ssub.s32 %s14, 1
      %s20 = ssub.s32 %s14, 2
      %s21 = sadd.s32 %s14, 1
      %s23 = sadd.s32 %s22, 1
      %p26 = scmp.eq.s32.totalorder %s14, 1
      %p27 = scmp.ne.s32.totalorder %s22, %s24
      %p28 = scmp.eq.s32.totalorder %s14, 0
      %p29 = por %p27, %p28
      %p30 = scmp.ne.s32.totalorder %s22, %s24
      %p31 = scmp.eq.s32.totalorder %s19, 1
      %p32 = por %p30, %p31
      %p33 = scmp.ne.s32.totalorder %s24, %s25
      %p34 = scmp.eq.s32.totalorder %s19, 0
      %p35 = por %p33, %p34
      %p36 = scmp.ne.s32.totalorder %s24, %s25
      %p37 = scmp.eq.s32.totalorder %s20, 1
      %p38 = por %p36, %p37
      %p40 = scmp.ne.s32.totalorder %s25, %s39
      %p41 = scmp.eq.s32.totalorder %s20, 0
      %p42 = por %p40, %p41
      %s44 = sadd.s32 %s43, 1
      %p47 = scmp.eq.s32.totalorder %s14, 1
      %p48 = scmp.ne.s32.totalorder %s43, %s45
      %p49 = scmp.eq.s32.totalorder %s14, 0
      %p50 = por %p48, %p49
      %p51 = scmp.ne.s32.totalorder %s43, %s45
      %p52 = scmp.eq.s32.totalorder %s19, 1
      %p53 = por %p51, %p52
      %p54 = scmp.ne.s32.totalorder %s45, %s46
      %p55 = scmp.eq.s32.totalorder %s19, 0
      %p56 = por %p54, %p55
      %p57 = scmp.ne.s32.totalorder %s45, %s46
      %p58 = scmp.eq.s32.totalorder %s20, 1
      %p59 = por %p57, %p58
      %p61 = scmp.ne.s32.totalorder %s46, %s60
      %p62 = scmp.eq.s32.totalorder %s20, 0
      %p63 = por %p61, %p62
      %s64 = ssub.s32 %s14, %s21
      %p65 = scmp.eq.s32.totalorder %s64, 0
      %s67 = sadd.s32 %s66, 1
      %s68 = scalar_select %p65, %s66, %s67
      %p71 = pneg %p65
      %p72 = scmp.eq.s32.totalorder %s14, 1
      %p73 = por %p71, %p72
      %p74 = scmp.ne.s32.totalorder %s66, %s69
      %p75 = scmp.eq.s32.totalorder %s14, 0
      %p76 = por %p74, %p75
      %p77 = scmp.ne.s32.totalorder %s66, %s69
      %p78 = scmp.eq.s32.totalorder %s19, 1
      %p79 = por %p77, %p78
      %p80 = scmp.ne.s32.totalorder %s69, %s70
      %p81 = scmp.eq.s32.totalorder %s19, 0
      %p82 = por %p80, %p81
      %p83 = scmp.ne.s32.totalorder %s69, %s70
      %p84 = scmp.eq.s32.totalorder %s20, 1
      %p85 = por %p83, %p84
      %p87 = scmp.ne.s32.totalorder %s70, %s86
      %p88 = scmp.eq.s32.totalorder %s20, 0
      %p89 = por %p87, %p88
      %s90 = ssub.s32 %s14, %s21
      %p91 = scmp.eq.s32.totalorder %s90, 0
      %s93 = sadd.s32 %s92, 1
      %s94 = scalar_select %p91, %s92, %s93
      %p97 = pneg %p91
      %p98 = scmp.eq.s32.totalorder %s14, 1
      %p99 = por %p97, %p98
      %p100 = scmp.ne.s32.totalorder %s92, %s95
      %p101 = scmp.eq.s32.totalorder %s14, 0
      %p102 = por %p100, %p101
      %p103 = scmp.ne.s32.totalorder %s92, %s95
      %p104 = scmp.eq.s32.totalorder %s19, 1
      %p105 = por %p103, %p104
      %p106 = scmp.ne.s32.totalorder %s95, %s96
      %p107 = scmp.eq.s32.totalorder %s19, 0
      %p108 = por %p106, %p107
      %p109 = scmp.ne.s32.totalorder %s95, %s96
      %p110 = scmp.eq.s32.totalorder %s20, 1
      %p111 = por %p109, %p110
      %p113 = scmp.ne.s32.totalorder %s96, %s112
      %p114 = scmp.eq.s32.totalorder %s20, 0
      %p115 = por %p113, %p114
      %p116 = scmp.le.s32.totalorder 1, %s14
      %p117 = scmp.lt.s32.totalorder %s14, 3
      %p118 = pnand %p116, %p117
      %p119 = pneg %p118
      // Predicated region
      $region9: #{tpu_custom_call.1} parent=5 // pred_check
        _
      $region10: #{tpu_custom_call.1} parent=5 // pred_check_branch
        %121 = sbr.rel (%p118) target = $region12
      $region11: #{tpu_custom_call.1} parent=5 // pred_region
        %s122 = ssub.s32 %s14, 1
        // Predicated region
        $region13: #{tpu_custom_call.1} parent=11 // pred_check
          %p123 = pneg %p35
        $region14: #{tpu_custom_call.1} parent=11 // pred_check_branch
          %125 = sbr.rel (%p123) target = $region16
        $region15: #{tpu_custom_call.1} parent=11 // pred_region
          %s127 = ssub.s32 256, 256
          %128 = vsyncadd [#allocation3], %s127
          %s129 = sshll.u32 [#allocation2], 4
          %s130 = int_to_ptr.vmem [resolvable:$true] %s129
          %135 = dma.hbm_to_vmem [thread:$0]  %s0, 256, %s130, [#allocation3], 128, 128, 8
        $region16: #{tpu_custom_call.1} parent=11 // pred_fallthru
          _
        // Predicated region
        $region17: #{tpu_custom_call.1} parent=11 // pred_check
          %p136 = pneg %p56
        $region18: #{tpu_custom_call.1} parent=11 // pred_check_branch
          %138 = sbr.rel (%p136) target = $region20
        $region19: #{tpu_custom_call.1} parent=11 // pred_region
          %s140 = ssub.s32 256, 256
          %141 = vsyncadd [#allocation6], %s140
          %s142 = sshll.u32 [#allocation5], 4
          %s143 = int_to_ptr.vmem [resolvable:$true] %s142
          %148 = dma.hbm_to_vmem [thread:$0]  %s1, 256, %s143, [#allocation6], 128, 128, 8
        $region20: #{tpu_custom_call.1} parent=11 // pred_fallthru
          _
      $region12: #{tpu_custom_call.1} parent=5 // pred_fallthru
        _
      %p149 = scmp.lt.s32.totalorder %s14, 2
      // Predicated region
      $region21: #{tpu_custom_call.1} parent=5 // pred_check
        %p150 = pneg %p149
      $region22: #{tpu_custom_call.1} parent=5 // pred_check_branch
        %152 = sbr.rel (%p150) target = $region24
      $region23: #{tpu_custom_call.1} parent=5 // pred_region
        // Predicated region
        $region25: #{tpu_custom_call.1} parent=23 // pred_check
          %p153 = pneg %p76
        $region26: #{tpu_custom_call.1} parent=23 // pred_check_branch
          %155 = sbr.rel (%p153) target = $region28
        $region27: #{tpu_custom_call.1} parent=23 // pred_region
          %s156 = sand.u32 %s14, 1
          %s157 = scalar_lea.sflag [#allocation3], %s156
          %s158 = sand.u32 %s66, 1
          %s159 = smul.addr %s158, 64
          %s160 = scalar_lea.vmem [#allocation7], %s159
          %s162 = ssub.s32 1024, 1024
          %163 = vsyncadd %s157, %s162
          %s164 = smul.addr %s14, 8
          %s165 = smul.addr %s164, 128
          %s166 = scalar_lea.hbm %s2, %s165
          %s167 = sshll.u32 %s160, 4
          %s168 = int_to_ptr.vmem [resolvable:$true] %s167
          %173 = dma.hbm_to_vmem [thread:$0]  %s166, 1024, %s168, %s157, 128, 128, 8
        $region28: #{tpu_custom_call.1} parent=23 // pred_fallthru
          _
      $region24: #{tpu_custom_call.1} parent=5 // pred_fallthru
        _
      %p174 = scmp.le.s32.totalorder 1, %s14
      %p175 = scmp.lt.s32.totalorder %s14, 3
      %p176 = pnand %p174, %p175
      %p177 = pneg %p176
      // Predicated region
      $region29: #{tpu_custom_call.1} parent=5 // pred_check
        _
      $region30: #{tpu_custom_call.1} parent=5 // pred_check_branch
        %179 = sbr.rel (%p176) target = $region32
      $region31: #{tpu_custom_call.1} parent=5 // pred_region
        %s180 = ssub.s32 %s14, 1
        // Predicated region
        $region33: #{tpu_custom_call.1} parent=31 // pred_check
          %p181 = pneg %p35
        $region34: #{tpu_custom_call.1} parent=31 // pred_check_branch
          %183 = sbr.rel (%p181) target = $region36
        $region35: #{tpu_custom_call.1} parent=31 // pred_region
          %184 = dma.done [#allocation3], 256
        $region36: #{tpu_custom_call.1} parent=31 // pred_fallthru
          _
        // Predicated region
        $region37: #{tpu_custom_call.1} parent=31 // pred_check
          %p185 = pneg %p56
        $region38: #{tpu_custom_call.1} parent=31 // pred_check_branch
          %187 = sbr.rel (%p185) target = $region40
        $region39: #{tpu_custom_call.1} parent=31 // pred_region
          %188 = dma.done [#allocation6], 256
        $region40: #{tpu_custom_call.1} parent=31 // pred_fallthru
          _
        %s189 = sand.u32 %s19, 1
        %s190 = scalar_lea.sflag [#allocation3], %s189
        %s191 = sand.u32 %s69, 1
        %s192 = smul.addr %s191, 64
        %s193 = scalar_lea.vmem [#allocation7], %s192
        // Predicated region
        $region41: #{tpu_custom_call.1} parent=31 // pred_check
          %p194 = pneg %p82
        $region42: #{tpu_custom_call.1} parent=31 // pred_check_branch
          %196 = sbr.rel (%p194) target = $region44
        $region43: #{tpu_custom_call.1} parent=31 // pred_region
          %197 = dma.done %s190, 1024
        $region44: #{tpu_custom_call.1} parent=31 // pred_fallthru
          _
        %p198 = pneg %p35
        %p199 = pneg %p32
        %p200 = pneg %p56
        %p201 = pneg %p53
        %s202 = sand.u32 %s19, 1
        %s203 = scalar_lea.sflag [#allocation3], %s202
        %s204 = sand.u32 %s69, 1
        %s205 = smul.addr %s204, 64
        %s206 = scalar_lea.vmem [#allocation7], %s205
        %p207 = pneg %p82
        %p208 = pneg %p79
        %p209 = pneg %p108
        %p210 = pneg %p105
        %s211 = sand.u32 %s95, 1
        %s212 = scalar_lea.sflag [#allocation4], %s211
        %s213 = sand.u32 %s95, 1
        %s214 = smul.addr %s213, 64
        %s215 = scalar_lea.vmem [#allocation8], %s214
        %v216 = vld [vmem:[#allocation2] sm:$0xff]
        %v217 = vld [vmem:[#allocation2 + $0x8] sm:$0xff]
        %v218 = vld [vmem:[#allocation5] sm:$0xff]
        %v219 = vld [vmem:[#allocation5 + $0x8] sm:$0xff]
        %v220 = vld [vmem:[%s193] sm:$0xff]
        %v221 = vld [vmem:[%s193 + $0x8] sm:$0xff]
        %vm222 = vcmask 130048
        %v224 = vsel %vm222, %v216, 0
        %v227 = vsel %vm222, %v217, 0
        %229 = vmatprep.subr.mxu0 0.0
        %230 = vmatpush1.msra.mxu0 %v220
        %231 = vmatprep.subr.mxu0 0.0
        %232 = vmatpush1.msra.mxu0 %v221
        %233 = vmatprep.subr.mxu0 0.0
        %234 = vmatpush1.msra.mxu0 0.0
        %235 = vmatprep.subr.mxu0 0.0
        %236 = vmatpush1.msra.mxu0 0.0
        %237 = vmatprep.subr.mxu0 0.0
        %238 = vmatpush1.msra.mxu0 0.0
        %239 = vmatprep.subr.mxu0 0.0
        %240 = vmatpush1.msra.mxu0 0.0
        %241 = vmatprep.subr.mxu0 0.0
        %242 = vmatpush1.msra.mxu0 0.0
        %243 = vmatprep.subr.mxu0 0.0
        %244 = vmatpush1.msra.mxu0 0.0
        %245 = vmatprep.subr.mxu0 0.0
        %246 = vmatpush1.msra.mxu0 0.0
        %247 = vmatprep.subr.mxu0 0.0
        %248 = vmatpush1.msra.mxu0 0.0
        %249 = vmatprep.subr.mxu0 0.0
        %250 = vmatpush1.msra.mxu0 0.0
        %251 = vmatprep.subr.mxu0 0.0
        %252 = vmatpush1.msra.mxu0 0.0
        %253 = vmatprep.subr.mxu0 0.0
        %254 = vmatpush1.msra.mxu0 0.0
        %255 = vmatprep.subr.mxu0 0.0
        %256 = vmatpush1.msra.mxu0 0.0
        %257 = vmatprep.subr.mxu0 0.0
        %258 = vmatpush1.msra.mxu0 0.0
        %259 = vmatprep.subr.mxu0 0.0
        %260 = vmatpush1.msra.mxu0 0.0
        %261 = vmatprep.subr.mxu0 0.0
        %262 = vmatpush1.msra.mxu0 0.0
        %263 = vmatprep.subr.mxu0 0.0
        %264 = vmatpush1.msra.mxu0 0.0
        %265 = vmatprep.subr.mxu0 0.0
        %266 = vmatpush1.msra.mxu0 0.0
        %267 = vmatprep.subr.mxu0 0.0
        %268 = vmatpush1.msra.mxu0 0.0
        %269 = vmatprep.subr.mxu0 0.0
        %270 = vmatpush1.msra.mxu0 0.0
        %271 = vmatprep.subr.mxu0 0.0
        %272 = vmatpush1.msra.mxu0 0.0
        %273 = vmatprep.subr.mxu0 0.0
        %274 = vmatpush1.msra.mxu0 0.0
        %275 = vmatprep.subr.mxu0 0.0
        %276 = vmatpush1.msra.mxu0 0.0
        %277 = vmatprep.subr.mxu0 0.0
        %278 = vmatpush1.msra.mxu0 0.0
        %279 = vmatprep.subr.mxu0 0.0
        %280 = vmatpush1.msra.mxu0 0.0
        %281 = vmatprep.subr.mxu0 0.0
        %282 = vmatpush1.msra.mxu0 0.0
        %283 = vmatprep.subr.mxu0 0.0
        %284 = vmatpush1.msra.mxu0 0.0
        %285 = vmatprep.subr.mxu0 0.0
        %286 = vmatpush1.msra.mxu0 0.0
        %287 = vmatprep.subr.mxu0 0.0
        %288 = vmatpush1.msra.mxu0 0.0
        %289 = vmatprep.subr.mxu0 0.0
        %290 = vmatpush1.msra.mxu0 0.0
        %291 = vmatprep.subr.mxu0 0.0
        %292 = vmatpush1.msra.mxu0 0.0
        %293 = vmatprep.mubr.f32.mxu0 0.0
        %294 = vmatmul.mubr.f32.gmra.mrb[0].mxu0 %v224
        %v295 = vpop.f32.mrb[0].mxu0
        %v296 = vadd.f32 0.0, %v295
        %v297 = vpop.f32.mrb[0].mxu0
        %298 = vmatprep.mubr.f32.mxu0 0.0
        %299 = vmatmul.mubr.f32.gmra.mrb[0].mxu0 %v227
        %v300 = vpop.f32.mrb[0].mxu0
        %v301 = vadd.f32 0.0, %v300
        %v302 = vpop.f32.mrb[0].mxu0
        %303 = vdwg.mxu0
        %v305 = vsel %vm222, %v296, 0
        %v308 = vsel %vm222, %v301, 0
        %310 = vmatprep.subr.mxu0 0.0
        %311 = vmatpush1.msra.mxu0 %v218
        %312 = vmatprep.subr.mxu0 0.0
        %313 = vmatpush1.msra.mxu0 %v219
        %314 = vmatprep.subr.mxu0 0.0
        %315 = vmatpush1.msra.mxu0 0.0
        %316 = vmatprep.subr.mxu0 0.0
        %317 = vmatpush1.msra.mxu0 0.0
        %318 = vmatprep.subr.mxu0 0.0
        %319 = vmatpush1.msra.mxu0 0.0
        %320 = vmatprep.subr.mxu0 0.0
        %321 = vmatpush1.msra.mxu0 0.0
        %322 = vmatprep.subr.mxu0 0.0
        %323 = vmatpush1.msra.mxu0 0.0
        %324 = vmatprep.subr.mxu0 0.0
        %325 = vmatpush1.msra.mxu0 0.0
        %326 = vmatprep.subr.mxu0 0.0
        %327 = vmatpush1.msra.mxu0 0.0
        %328 = vmatprep.subr.mxu0 0.0
        %329 = vmatpush1.msra.mxu0 0.0
        %330 = vmatprep.subr.mxu0 0.0
        %331 = vmatpush1.msra.mxu0 0.0
        %332 = vmatprep.subr.mxu0 0.0
        %333 = vmatpush1.msra.mxu0 0.0
        %334 = vmatprep.subr.mxu0 0.0
        %335 = vmatpush1.msra.mxu0 0.0
        %336 = vmatprep.subr.mxu0 0.0
        %337 = vmatpush1.msra.mxu0 0.0
        %338 = vmatprep.subr.mxu0 0.0
        %339 = vmatpush1.msra.mxu0 0.0
        %340 = vmatprep.subr.mxu0 0.0
        %341 = vmatpush1.msra.mxu0 0.0
        %342 = vmatprep.subr.mxu0 0.0
        %343 = vmatpush1.msra.mxu0 0.0
        %344 = vmatprep.subr.mxu0 0.0
        %345 = vmatpush1.msra.mxu0 0.0
        %346 = vmatprep.subr.mxu0 0.0
        %347 = vmatpush1.msra.mxu0 0.0
        %348 = vmatprep.subr.mxu0 0.0
        %349 = vmatpush1.msra.mxu0 0.0
        %350 = vmatprep.subr.mxu0 0.0
        %351 = vmatpush1.msra.mxu0 0.0
        %352 = vmatprep.subr.mxu0 0.0
        %353 = vmatpush1.msra.mxu0 0.0
        %354 = vmatprep.subr.mxu0 0.0
        %355 = vmatpush1.msra.mxu0 0.0
        %356 = vmatprep.subr.mxu0 0.0
        %357 = vmatpush1.msra.mxu0 0.0
        %358 = vmatprep.subr.mxu0 0.0
        %359 = vmatpush1.msra.mxu0 0.0
        %360 = vmatprep.subr.mxu0 0.0
        %361 = vmatpush1.msra.mxu0 0.0
        %362 = vmatprep.subr.mxu0 0.0
        %363 = vmatpush1.msra.mxu0 0.0
        %364 = vmatprep.subr.mxu0 0.0
        %365 = vmatpush1.msra.mxu0 0.0
        %366 = vmatprep.subr.mxu0 0.0
        %367 = vmatpush1.msra.mxu0 0.0
        %368 = vmatprep.subr.mxu0 0.0
        %369 = vmatpush1.msra.mxu0 0.0
        %370 = vmatprep.subr.mxu0 0.0
        %371 = vmatpush1.msra.mxu0 0.0
        %372 = vmatprep.subr.mxu0 0.0
        %373 = vmatpush1.msra.mxu0 0.0
        %374 = vmatprep.mubr.f32.mxu0 0.0
        %375 = vmatmul.mubr.f32.gmra.mrb[0].mxu0 %v305
        %v376 = vpop.f32.mrb[0].mxu0
        %v377 = vadd.f32 0.0, %v376
        %v378 = vpop.f32.mrb[0].mxu0
        %379 = vmatprep.mubr.f32.mxu0 0.0
        %380 = vmatmul.mubr.f32.gmra.mrb[0].mxu0 %v308
        %v381 = vpop.f32.mrb[0].mxu0
        %v382 = vadd.f32 0.0, %v381
        %v383 = vpop.f32.mrb[0].mxu0
        %384 = vdwg.mxu0
        %385 = vst.msk [vmem:[%s215] sm:$0xff] %vm222, %v377
        %386 = vst.msk [vmem:[%s215 + $0x8] sm:$0xff] %vm222, %v382
        %s387 = scalar_lea.vmem %s193, 16 [#allocation7]
        %v388 = vld [vmem:[%s387] sm:$0xff]
        %v389 = vld [vmem:[%s387 + $0x8] sm:$0xff]
        %390 = vmatprep.subr.mxu0 0.0
        %391 = vmatpush1.msra.mxu0 %v388
        %392 = vmatprep.subr.mxu0 0.0
        %393 = vmatpush1.msra.mxu0 %v389
        %394 = vmatprep.subr.mxu0 0.0
        %395 = vmatpush1.msra.mxu0 0.0
        %396 = vmatprep.subr.mxu0 0.0
        %397 = vmatpush1.msra.mxu0 0.0
        %398 = vmatprep.subr.mxu0 0.0
        %399 = vmatpush1.msra.mxu0 0.0
        %400 = vmatprep.subr.mxu0 0.0
        %401 = vmatpush1.msra.mxu0 0.0
        %402 = vmatprep.subr.mxu0 0.0
        %403 = vmatpush1.msra.mxu0 0.0
        %404 = vmatprep.subr.mxu0 0.0
        %405 = vmatpush1.msra.mxu0 0.0
        %406 = vmatprep.subr.mxu0 0.0
        %407 = vmatpush1.msra.mxu0 0.0
        %408 = vmatprep.subr.mxu0 0.0
        %409 = vmatpush1.msra.mxu0 0.0
        %410 = vmatprep.subr.mxu0 0.0
        %411 = vmatpush1.msra.mxu0 0.0
        %412 = vmatprep.subr.mxu0 0.0
        %413 = vmatpush1.msra.mxu0 0.0
        %414 = vmatprep.subr.mxu0 0.0
        %415 = vmatpush1.msra.mxu0 0.0
        %416 = vmatprep.subr.mxu0 0.0
        %417 = vmatpush1.msra.mxu0 0.0
        %418 = vmatprep.subr.mxu0 0.0
        %419 = vmatpush1.msra.mxu0 0.0
        %420 = vmatprep.subr.mxu0 0.0
        %421 = vmatpush1.msra.mxu0 0.0
        %422 = vmatprep.subr.mxu0 0.0
        %423 = vmatpush1.msra.mxu0 0.0
        %424 = vmatprep.subr.mxu0 0.0
        %425 = vmatpush1.msra.mxu0 0.0
        %426 = vmatprep.subr.mxu0 0.0
        %427 = vmatpush1.msra.mxu0 0.0
        %428 = vmatprep.subr.mxu0 0.0
        %429 = vmatpush1.msra.mxu0 0.0
        %430 = vmatprep.subr.mxu0 0.0
        %431 = vmatpush1.msra.mxu0 0.0
        %432 = vmatprep.subr.mxu0 0.0
        %433 = vmatpush1.msra.mxu0 0.0
        %434 = vmatprep.subr.mxu0 0.0
        %435 = vmatpush1.msra.mxu0 0.0
        %436 = vmatprep.subr.mxu0 0.0
        %437 = vmatpush1.msra.mxu0 0.0
        %438 = vmatprep.subr.mxu0 0.0
        %439 = vmatpush1.msra.mxu0 0.0
        %440 = vmatprep.subr.mxu0 0.0
        %441 = vmatpush1.msra.mxu0 0.0
        %442 = vmatprep.subr.mxu0 0.0
        %443 = vmatpush1.msra.mxu0 0.0
        %444 = vmatprep.subr.mxu0 0.0
        %445 = vmatpush1.msra.mxu0 0.0
        %446 = vmatprep.subr.mxu0 0.0
        %447 = vmatpush1.msra.mxu0 0.0
        %448 = vmatprep.subr.mxu0 0.0
        %449 = vmatpush1.msra.mxu0 0.0
        %450 = vmatprep.subr.mxu0 0.0
        %451 = vmatpush1.msra.mxu0 0.0
        %452 = vmatprep.subr.mxu0 0.0
        %453 = vmatpush1.msra.mxu0 0.0
        %454 = vmatprep.mubr.f32.mxu0 0.0
        %455 = vmatmul.mubr.f32.gmra.mrb[0].mxu0 %v224
        %v456 = vpop.f32.mrb[0].mxu0
        %v457 = vadd.f32 0.0, %v456
        %v458 = vpop.f32.mrb[0].mxu0
        %459 = vmatprep.mubr.f32.mxu0 0.0
        %460 = vmatmul.mubr.f32.gmra.mrb[0].mxu0 %v227
        %v461 = vpop.f32.mrb[0].mxu0
        %v462 = vadd.f32 0.0, %v461
        %v463 = vpop.f32.mrb[0].mxu0
        %464 = vdwg.mxu0
        %v466 = vsel %vm222, %v457, 0
        %v469 = vsel %vm222, %v462, 0
        %471 = vmatprep.subr.mxu0 0.0
        %472 = vmatpush1.msra.mxu0 %v218
        %473 = vmatprep.subr.mxu0 0.0
        %474 = vmatpush1.msra.mxu0 %v219
        %475 = vmatprep.subr.mxu0 0.0
        %476 = vmatpush1.msra.mxu0 0.0
        %477 = vmatprep.subr.mxu0 0.0
        %478 = vmatpush1.msra.mxu0 0.0
        %479 = vmatprep.subr.mxu0 0.0
        %480 = vmatpush1.msra.mxu0 0.0
        %481 = vmatprep.subr.mxu0 0.0
        %482 = vmatpush1.msra.mxu0 0.0
        %483 = vmatprep.subr.mxu0 0.0
        %484 = vmatpush1.msra.mxu0 0.0
        %485 = vmatprep.subr.mxu0 0.0
        %486 = vmatpush1.msra.mxu0 0.0
        %487 = vmatprep.subr.mxu0 0.0
        %488 = vmatpush1.msra.mxu0 0.0
        %489 = vmatprep.subr.mxu0 0.0
        %490 = vmatpush1.msra.mxu0 0.0
        %491 = vmatprep.subr.mxu0 0.0
        %492 = vmatpush1.msra.mxu0 0.0
        %493 = vmatprep.subr.mxu0 0.0
        %494 = vmatpush1.msra.mxu0 0.0
        %495 = vmatprep.subr.mxu0 0.0
        %496 = vmatpush1.msra.mxu0 0.0
        %497 = vmatprep.subr.mxu0 0.0
        %498 = vmatpush1.msra.mxu0 0.0
        %499 = vmatprep.subr.mxu0 0.0
        %500 = vmatpush1.msra.mxu0 0.0
        %501 = vmatprep.subr.mxu0 0.0
        %502 = vmatpush1.msra.mxu0 0.0
        %503 = vmatprep.subr.mxu0 0.0
        %504 = vmatpush1.msra.mxu0 0.0
        %505 = vmatprep.subr.mxu0 0.0
        %506 = vmatpush1.msra.mxu0 0.0
        %507 = vmatprep.subr.mxu0 0.0
        %508 = vmatpush1.msra.mxu0 0.0
        %509 = vmatprep.subr.mxu0 0.0
        %510 = vmatpush1.msra.mxu0 0.0
        %511 = vmatprep.subr.mxu0 0.0
        %512 = vmatpush1.msra.mxu0 0.0
        %513 = vmatprep.subr.mxu0 0.0
        %514 = vmatpush1.msra.mxu0 0.0
        %515 = vmatprep.subr.mxu0 0.0
        %516 = vmatpush1.msra.mxu0 0.0
        %517 = vmatprep.subr.mxu0 0.0
        %518 = vmatpush1.msra.mxu0 0.0
        %519 = vmatprep.subr.mxu0 0.0
        %520 = vmatpush1.msra.mxu0 0.0
        %521 = vmatprep.subr.mxu0 0.0
        %522 = vmatpush1.msra.mxu0 0.0
        %523 = vmatprep.subr.mxu0 0.0
        %524 = vmatpush1.msra.mxu0 0.0
        %525 = vmatprep.subr.mxu0 0.0
        %526 = vmatpush1.msra.mxu0 0.0
        %527 = vmatprep.subr.mxu0 0.0
        %528 = vmatpush1.msra.mxu0 0.0
        %529 = vmatprep.subr.mxu0 0.0
        %530 = vmatpush1.msra.mxu0 0.0
        %531 = vmatprep.subr.mxu0 0.0
        %532 = vmatpush1.msra.mxu0 0.0
        %533 = vmatprep.subr.mxu0 0.0
        %534 = vmatpush1.msra.mxu0 0.0
        %535 = vmatprep.mubr.f32.mxu0 0.0
        %536 = vmatmul.mubr.f32.gmra.mrb[0].mxu0 %v466
        %v537 = vpop.f32.mrb[0].mxu0
        %v538 = vadd.f32 0.0, %v537
        %v539 = vpop.f32.mrb[0].mxu0
        %540 = vmatprep.mubr.f32.mxu0 0.0
        %541 = vmatmul.mubr.f32.gmra.mrb[0].mxu0 %v469
        %v542 = vpop.f32.mrb[0].mxu0
        %v543 = vadd.f32 0.0, %v542
        %v544 = vpop.f32.mrb[0].mxu0
        %545 = vdwg.mxu0
        %s546 = scalar_lea.vmem %s215, 16 [#allocation8]
        %547 = vst.msk [vmem:[%s546] sm:$0xff] %vm222, %v538
        %548 = vst.msk [vmem:[%s546 + $0x8] sm:$0xff] %vm222, %v543
        %s549 = scalar_lea.vmem %s193, 32 [#allocation7]
        %v550 = vld [vmem:[%s549] sm:$0xff]
        %v551 = vld [vmem:[%s549 + $0x8] sm:$0xff]
        %552 = vmatprep.subr.mxu0 0.0
        %553 = vmatpush1.msra.mxu0 %v550
        %554 = vmatprep.subr.mxu0 0.0
        %555 = vmatpush1.msra.mxu0 %v551
        %556 = vmatprep.subr.mxu0 0.0
        %557 = vmatpush1.msra.mxu0 0.0
        %558 = vmatprep.subr.mxu0 0.0
        %559 = vmatpush1.msra.mxu0 0.0
        %560 = vmatprep.subr.mxu0 0.0
        %561 = vmatpush1.msra.mxu0 0.0
        %562 = vmatprep.subr.mxu0 0.0
        %563 = vmatpush1.msra.mxu0 0.0
        %564 = vmatprep.subr.mxu0 0.0
        %565 = vmatpush1.msra.mxu0 0.0
        %566 = vmatprep.subr.mxu0 0.0
        %567 = vmatpush1.msra.mxu0 0.0
        %568 = vmatprep.subr.mxu0 0.0
        %569 = vmatpush1.msra.mxu0 0.0
        %570 = vmatprep.subr.mxu0 0.0
        %571 = vmatpush1.msra.mxu0 0.0
        %572 = vmatprep.subr.mxu0 0.0
        %573 = vmatpush1.msra.mxu0 0.0
        %574 = vmatprep.subr.mxu0 0.0
        %575 = vmatpush1.msra.mxu0 0.0
        %576 = vmatprep.subr.mxu0 0.0
        %577 = vmatpush1.msra.mxu0 0.0
        %578 = vmatprep.subr.mxu0 0.0
        %579 = vmatpush1.msra.mxu0 0.0
        %580 = vmatprep.subr.mxu0 0.0
        %581 = vmatpush1.msra.mxu0 0.0
        %582 = vmatprep.subr.mxu0 0.0
        %583 = vmatpush1.msra.mxu0 0.0
        %584 = vmatprep.subr.mxu0 0.0
        %585 = vmatpush1.msra.mxu0 0.0
        %586 = vmatprep.subr.mxu0 0.0
        %587 = vmatpush1.msra.mxu0 0.0
        %588 = vmatprep.subr.mxu0 0.0
        %589 = vmatpush1.msra.mxu0 0.0
        %590 = vmatprep.subr.mxu0 0.0
        %591 = vmatpush1.msra.mxu0 0.0
        %592 = vmatprep.subr.mxu0 0.0
        %593 = vmatpush1.msra.mxu0 0.0
        %594 = vmatprep.subr.mxu0 0.0
        %595 = vmatpush1.msra.mxu0 0.0
        %596 = vmatprep.subr.mxu0 0.0
        %597 = vmatpush1.msra.mxu0 0.0
        %598 = vmatprep.subr.mxu0 0.0
        %599 = vmatpush1.msra.mxu0 0.0
        %600 = vmatprep.subr.mxu0 0.0
        %601 = vmatpush1.msra.mxu0 0.0
        %602 = vmatprep.subr.mxu0 0.0
        %603 = vmatpush1.msra.mxu0 0.0
        %604 = vmatprep.subr.mxu0 0.0
        %605 = vmatpush1.msra.mxu0 0.0
        %606 = vmatprep.subr.mxu0 0.0
        %607 = vmatpush1.msra.mxu0 0.0
        %608 = vmatprep.subr.mxu0 0.0
        %609 = vmatpush1.msra.mxu0 0.0
        %610 = vmatprep.subr.mxu0 0.0
        %611 = vmatpush1.msra.mxu0 0.0
        %612 = vmatprep.subr.mxu0 0.0
        %613 = vmatpush1.msra.mxu0 0.0
        %614 = vmatprep.subr.mxu0 0.0
        %615 = vmatpush1.msra.mxu0 0.0
        %616 = vmatprep.mubr.f32.mxu0 0.0
        %617 = vmatmul.mubr.f32.gmra.mrb[0].mxu0 %v224
        %v618 = vpop.f32.mrb[0].mxu0
        %v619 = vadd.f32 0.0, %v618
        %v620 = vpop.f32.mrb[0].mxu0
        %621 = vmatprep.mubr.f32.mxu0 0.0
        %622 = vmatmul.mubr.f32.gmra.mrb[0].mxu0 %v227
        %v623 = vpop.f32.mrb[0].mxu0
        %v624 = vadd.f32 0.0, %v623
        %v625 = vpop.f32.mrb[0].mxu0
        %626 = vdwg.mxu0
        %v628 = vsel %vm222, %v619, 0
        %v631 = vsel %vm222, %v624, 0
        %633 = vmatprep.subr.mxu0 0.0
        %634 = vmatpush1.msra.mxu0 %v218
        %635 = vmatprep.subr.mxu0 0.0
        %636 = vmatpush1.msra.mxu0 %v219
        %637 = vmatprep.subr.mxu0 0.0
        %638 = vmatpush1.msra.mxu0 0.0
        %639 = vmatprep.subr.mxu0 0.0
        %640 = vmatpush1.msra.mxu0 0.0
        %641 = vmatprep.subr.mxu0 0.0
        %642 = vmatpush1.msra.mxu0 0.0
        %643 = vmatprep.subr.mxu0 0.0
        %644 = vmatpush1.msra.mxu0 0.0
        %645 = vmatprep.subr.mxu0 0.0
        %646 = vmatpush1.msra.mxu0 0.0
        %647 = vmatprep.subr.mxu0 0.0
        %648 = vmatpush1.msra.mxu0 0.0
        %649 = vmatprep.subr.mxu0 0.0
        %650 = vmatpush1.msra.mxu0 0.0
        %651 = vmatprep.subr.mxu0 0.0
        %652 = vmatpush1.msra.mxu0 0.0
        %653 = vmatprep.subr.mxu0 0.0
        %654 = vmatpush1.msra.mxu0 0.0
        %655 = vmatprep.subr.mxu0 0.0
        %656 = vmatpush1.msra.mxu0 0.0
        %657 = vmatprep.subr.mxu0 0.0
        %658 = vmatpush1.msra.mxu0 0.0
        %659 = vmatprep.subr.mxu0 0.0
        %660 = vmatpush1.msra.mxu0 0.0
        %661 = vmatprep.subr.mxu0 0.0
        %662 = vmatpush1.msra.mxu0 0.0
        %663 = vmatprep.subr.mxu0 0.0
        %664 = vmatpush1.msra.mxu0 0.0
        %665 = vmatprep.subr.mxu0 0.0
        %666 = vmatpush1.msra.mxu0 0.0
        %667 = vmatprep.subr.mxu0 0.0
        %668 = vmatpush1.msra.mxu0 0.0
        %669 = vmatprep.subr.mxu0 0.0
        %670 = vmatpush1.msra.mxu0 0.0
        %671 = vmatprep.subr.mxu0 0.0
        %672 = vmatpush1.msra.mxu0 0.0
        %673 = vmatprep.subr.mxu0 0.0
        %674 = vmatpush1.msra.mxu0 0.0
        %675 = vmatprep.subr.mxu0 0.0
        %676 = vmatpush1.msra.mxu0 0.0
        %677 = vmatprep.subr.mxu0 0.0
        %678 = vmatpush1.msra.mxu0 0.0
        %679 = vmatprep.subr.mxu0 0.0
        %680 = vmatpush1.msra.mxu0 0.0
        %681 = vmatprep.subr.mxu0 0.0
        %682 = vmatpush1.msra.mxu0 0.0
        %683 = vmatprep.subr.mxu0 0.0
        %684 = vmatpush1.msra.mxu0 0.0
        %685 = vmatprep.subr.mxu0 0.0
        %686 = vmatpush1.msra.mxu0 0.0
        %687 = vmatprep.subr.mxu0 0.0
        %688 = vmatpush1.msra.mxu0 0.0
        %689 = vmatprep.subr.mxu0 0.0
        %690 = vmatpush1.msra.mxu0 0.0
        %691 = vmatprep.subr.mxu0 0.0
        %692 = vmatpush1.msra.mxu0 0.0
        %693 = vmatprep.subr.mxu0 0.0
        %694 = vmatpush1.msra.mxu0 0.0
        %695 = vmatprep.subr.mxu0 0.0
        %696 = vmatpush1.msra.mxu0 0.0
        %697 = vmatprep.mubr.f32.mxu0 0.0
        %698 = vmatmul.mubr.f32.gmra.mrb[0].mxu0 %v628
        %v699 = vpop.f32.mrb[0].mxu0
        %v700 = vadd.f32 0.0, %v699
        %v701 = vpop.f32.mrb[0].mxu0
        %702 = vmatprep.mubr.f32.mxu0 0.0
        %703 = vmatmul.mubr.f32.gmra.mrb[0].mxu0 %v631
        %v704 = vpop.f32.mrb[0].mxu0
        %v705 = vadd.f32 0.0, %v704
        %v706 = vpop.f32.mrb[0].mxu0
        %707 = vdwg.mxu0
        %s708 = scalar_lea.vmem %s215, 32 [#allocation8]
        %709 = vst.msk [vmem:[%s708] sm:$0xff] %vm222, %v700
        %710 = vst.msk [vmem:[%s708 + $0x8] sm:$0xff] %vm222, %v705
        %s711 = scalar_lea.vmem %s193, 48 [#allocation7]
        %v712 = vld [vmem:[%s711] sm:$0xff]
        %v713 = vld [vmem:[%s711 + $0x8] sm:$0xff]
        %714 = vmatprep.subr.mxu0 0.0
        %715 = vmatpush1.msra.mxu0 %v712
        %716 = vmatprep.subr.mxu0 0.0
        %717 = vmatpush1.msra.mxu0 %v713
        %718 = vmatprep.subr.mxu0 0.0
        %719 = vmatpush1.msra.mxu0 0.0
        %720 = vmatprep.subr.mxu0 0.0
        %721 = vmatpush1.msra.mxu0 0.0
        %722 = vmatprep.subr.mxu0 0.0
        %723 = vmatpush1.msra.mxu0 0.0
        %724 = vmatprep.subr.mxu0 0.0
        %725 = vmatpush1.msra.mxu0 0.0
        %726 = vmatprep.subr.mxu0 0.0
        %727 = vmatpush1.msra.mxu0 0.0
        %728 = vmatprep.subr.mxu0 0.0
        %729 = vmatpush1.msra.mxu0 0.0
        %730 = vmatprep.subr.mxu0 0.0
        %731 = vmatpush1.msra.mxu0 0.0
        %732 = vmatprep.subr.mxu0 0.0
        %733 = vmatpush1.msra.mxu0 0.0
        %734 = vmatprep.subr.mxu0 0.0
        %735 = vmatpush1.msra.mxu0 0.0
        %736 = vmatprep.subr.mxu0 0.0
        %737 = vmatpush1.msra.mxu0 0.0
        %738 = vmatprep.subr.mxu0 0.0
        %739 = vmatpush1.msra.mxu0 0.0
        %740 = vmatprep.subr.mxu0 0.0
        %741 = vmatpush1.msra.mxu0 0.0
        %742 = vmatprep.subr.mxu0 0.0
        %743 = vmatpush1.msra.mxu0 0.0
        %744 = vmatprep.subr.mxu0 0.0
        %745 = vmatpush1.msra.mxu0 0.0
        %746 = vmatprep.subr.mxu0 0.0
        %747 = vmatpush1.msra.mxu0 0.0
        %748 = vmatprep.subr.mxu0 0.0
        %749 = vmatpush1.msra.mxu0 0.0
        %750 = vmatprep.subr.mxu0 0.0
        %751 = vmatpush1.msra.mxu0 0.0
        %752 = vmatprep.subr.mxu0 0.0
        %753 = vmatpush1.msra.mxu0 0.0
        %754 = vmatprep.subr.mxu0 0.0
        %755 = vmatpush1.msra.mxu0 0.0
        %756 = vmatprep.subr.mxu0 0.0
        %757 = vmatpush1.msra.mxu0 0.0
        %758 = vmatprep.subr.mxu0 0.0
        %759 = vmatpush1.msra.mxu0 0.0
        %760 = vmatprep.subr.mxu0 0.0
        %761 = vmatpush1.msra.mxu0 0.0
        %762 = vmatprep.subr.mxu0 0.0
        %763 = vmatpush1.msra.mxu0 0.0
        %764 = vmatprep.subr.mxu0 0.0
        %765 = vmatpush1.msra.mxu0 0.0
        %766 = vmatprep.subr.mxu0 0.0
        %767 = vmatpush1.msra.mxu0 0.0
        %768 = vmatprep.subr.mxu0 0.0
        %769 = vmatpush1.msra.mxu0 0.0
        %770 = vmatprep.subr.mxu0 0.0
        %771 = vmatpush1.msra.mxu0 0.0
        %772 = vmatprep.subr.mxu0 0.0
        %773 = vmatpush1.msra.mxu0 0.0
        %774 = vmatprep.subr.mxu0 0.0
        %775 = vmatpush1.msra.mxu0 0.0
        %776 = vmatprep.subr.mxu0 0.0
        %777 = vmatpush1.msra.mxu0 0.0
        %778 = vmatprep.mubr.f32.mxu0 0.0
        %779 = vmatmul.mubr.f32.gmra.mrb[0].mxu0 %v224
        %v780 = vpop.f32.mrb[0].mxu0
        %v781 = vadd.f32 0.0, %v780
        %v782 = vpop.f32.mrb[0].mxu0
        %783 = vmatprep.mubr.f32.mxu0 0.0
        %784 = vmatmul.mubr.f32.gmra.mrb[0].mxu0 %v227
        %v785 = vpop.f32.mrb[0].mxu0
        %v786 = vadd.f32 0.0, %v785
        %v787 = vpop.f32.mrb[0].mxu0
        %788 = vdwg.mxu0
        %v790 = vsel %vm222, %v781, 0
        %v793 = vsel %vm222, %v786, 0
        %795 = vmatprep.subr.mxu0 0.0
        %796 = vmatpush1.msra.mxu0 %v218
        %797 = vmatprep.subr.mxu0 0.0
        %798 = vmatpush1.msra.mxu0 %v219
        %799 = vmatprep.subr.mxu0 0.0
        %800 = vmatpush1.msra.mxu0 0.0
        %801 = vmatprep.subr.mxu0 0.0
        %802 = vmatpush1.msra.mxu0 0.0
        %803 = vmatprep.subr.mxu0 0.0
        %804 = vmatpush1.msra.mxu0 0.0
        %805 = vmatprep.subr.mxu0 0.0
        %806 = vmatpush1.msra.mxu0 0.0
        %807 = vmatprep.subr.mxu0 0.0
        %808 = vmatpush1.msra.mxu0 0.0
        %809 = vmatprep.subr.mxu0 0.0
        %810 = vmatpush1.msra.mxu0 0.0
        %811 = vmatprep.subr.mxu0 0.0
        %812 = vmatpush1.msra.mxu0 0.0
        %813 = vmatprep.subr.mxu0 0.0
        %814 = vmatpush1.msra.mxu0 0.0
        %815 = vmatprep.subr.mxu0 0.0
        %816 = vmatpush1.msra.mxu0 0.0
        %817 = vmatprep.subr.mxu0 0.0
        %818 = vmatpush1.msra.mxu0 0.0
        %819 = vmatprep.subr.mxu0 0.0
        %820 = vmatpush1.msra.mxu0 0.0
        %821 = vmatprep.subr.mxu0 0.0
        %822 = vmatpush1.msra.mxu0 0.0
        %823 = vmatprep.subr.mxu0 0.0
        %824 = vmatpush1.msra.mxu0 0.0
        %825 = vmatprep.subr.mxu0 0.0
        %826 = vmatpush1.msra.mxu0 0.0
        %827 = vmatprep.subr.mxu0 0.0
        %828 = vmatpush1.msra.mxu0 0.0
        %829 = vmatprep.subr.mxu0 0.0
        %830 = vmatpush1.msra.mxu0 0.0
        %831 = vmatprep.subr.mxu0 0.0
        %832 = vmatpush1.msra.mxu0 0.0
        %833 = vmatprep.subr.mxu0 0.0
        %834 = vmatpush1.msra.mxu0 0.0
        %835 = vmatprep.subr.mxu0 0.0
        %836 = vmatpush1.msra.mxu0 0.0
        %837 = vmatprep.subr.mxu0 0.0
        %838 = vmatpush1.msra.mxu0 0.0
        %839 = vmatprep.subr.mxu0 0.0
        %840 = vmatpush1.msra.mxu0 0.0
        %841 = vmatprep.subr.mxu0 0.0
        %842 = vmatpush1.msra.mxu0 0.0
        %843 = vmatprep.subr.mxu0 0.0
        %844 = vmatpush1.msra.mxu0 0.0
        %845 = vmatprep.subr.mxu0 0.0
        %846 = vmatpush1.msra.mxu0 0.0
        %847 = vmatprep.subr.mxu0 0.0
        %848 = vmatpush1.msra.mxu0 0.0
        %849 = vmatprep.subr.mxu0 0.0
        %850 = vmatpush1.msra.mxu0 0.0
        %851 = vmatprep.subr.mxu0 0.0
        %852 = vmatpush1.msra.mxu0 0.0
        %853 = vmatprep.subr.mxu0 0.0
        %854 = vmatpush1.msra.mxu0 0.0
        %855 = vmatprep.subr.mxu0 0.0
        %856 = vmatpush1.msra.mxu0 0.0
        %857 = vmatprep.subr.mxu0 0.0
        %858 = vmatpush1.msra.mxu0 0.0
        %859 = vmatprep.mubr.f32.mxu0 0.0
        %860 = vmatmul.mubr.f32.gmra.mrb[0].mxu0 %v790
        %v861 = vpop.f32.mrb[0].mxu0
        %v862 = vadd.f32 0.0, %v861
        %v863 = vpop.f32.mrb[0].mxu0
        %864 = vmatprep.mubr.f32.mxu0 0.0
        %865 = vmatmul.mubr.f32.gmra.mrb[0].mxu0 %v793
        %v866 = vpop.f32.mrb[0].mxu0
        %v867 = vadd.f32 0.0, %v866
        %v868 = vpop.f32.mrb[0].mxu0
        %869 = vdwg.mxu0
        %s870 = scalar_lea.vmem %s215, 48 [#allocation8]
        %871 = vst.msk [vmem:[%s870] sm:$0xff] %vm222, %v862
        %872 = vst.msk [vmem:[%s870 + $0x8] sm:$0xff] %vm222, %v867
        %s873 = sand.u32 %s95, 1
        %s874 = scalar_lea.sflag [#allocation4], %s873
        %s875 = sand.u32 %s95, 1
        %s876 = smul.addr %s875, 64
        %s877 = scalar_lea.vmem [#allocation8], %s876
        // Predicated region
        $region45: #{tpu_custom_call.1} parent=31 // pred_check
          %p878 = pneg %p105
        $region46: #{tpu_custom_call.1} parent=31 // pred_check_branch
          %880 = sbr.rel (%p878) target = $region48
        $region47: #{tpu_custom_call.1} parent=31 // pred_region
          %s882 = ssub.s32 1024, 1024
          %883 = vsyncadd %s874, %s882
          %s884 = smul.addr %s19, 8
          %s885 = smul.addr %s884, 128
          %s886 = scalar_lea.hbm %s3, %s885
          %s887 = sshll.u32 %s877, 4
          %s888 = int_to_ptr.vmem [resolvable:$true] %s887
          %893 = dma.vmem_to_hbm [thread:$0]  %s888, 1024, %s886, %s874, 128, 128, 8
        $region48: #{tpu_custom_call.1} parent=31 // pred_fallthru
          _
      $region32: #{tpu_custom_call.1} parent=5 // pred_fallthru
        _
      %p894 = scmp.le.s32.totalorder 2, %s14
      // Predicated region
      $region49: #{tpu_custom_call.1} parent=5 // pred_check
        %p895 = pneg %p894
      $region50: #{tpu_custom_call.1} parent=5 // pred_check_branch
        %897 = sbr.rel (%p895) target = $region52
      $region51: #{tpu_custom_call.1} parent=5 // pred_region
        %s898 = ssub.s32 %s14, 2
        // Predicated region
        $region53: #{tpu_custom_call.1} parent=51 // pred_check
          %p899 = pneg %p111
        $region54: #{tpu_custom_call.1} parent=51 // pred_check_branch
          %901 = sbr.rel (%p899) target = $region56
        $region55: #{tpu_custom_call.1} parent=51 // pred_region
          %s902 = sand.u32 %s96, 1
          %s903 = scalar_lea.sflag [#allocation4], %s902
          %s904 = sand.u32 %s96, 1
          %s905 = smul.addr %s904, 64
          %s906 = scalar_lea.vmem [#allocation8], %s905
          %907 = dma.done %s903, 1024
        $region56: #{tpu_custom_call.1} parent=51 // pred_fallthru
          _
      $region52: #{tpu_custom_call.1} parent=5 // pred_fallthru
        _
    $region6: #{tpu_custom_call.1} parent=1 // loop_footer
      %s18 = sadd.s32 1, %s14
    $region7: #{tpu_custom_call.1} parent=1 // loop_footer_branch
      %13 = sbr.rel target = $region3
    $region8: #{tpu_custom_call.1} parent=1 // loop_exit
      _
    %908 = vsyncpa [#allocation3], 1
    %s909 = scalar_lea.sflag [#allocation3], 1
    %910 = vsyncpa %s909, 1
    %911 = vsyncpa [#allocation6], 1
    %912 = vsyncpa [#allocation4], 1
    %s913 = scalar_lea.sflag [#allocation4], 1
    %914 = vsyncpa %s913, 1

</llo_original>
